<compile_context>
chip_gen: v7x
topology: tpu7x:2x2x1
jax: 0.10.0
libtpu: 0.0.40
codegen_flags: <defaults>
</compile_context>

<pallas_src>
import jax
import jax.numpy as jnp
from jax.experimental import pallas as pl
from jax.experimental.pallas import tpu as pltpu


LANE = 128
# 280 B of double-buffered VMEM per lane (in + 2 outs, f32); 64K lanes -> ~17.5 MiB,
# comfortably inside the 32 MiB vmem_limit_bytes requested below.
MAX_TILE_B = 65536


def autoencoder_kernel(xT_ref,
                       w1_ref, b1_ref, w2_ref, b2_ref,
                       w3_ref, b3_ref, w4_ref, b4_ref,
                       encT_ref, decT_ref):
    x = xT_ref[...].astype(jnp.float32)                                     # [16, TB]

    # ---- encoder: Linear(16,8) -> Tanh -> Linear(8,3) ----
    h1 = jnp.dot(w1_ref[...], x, preferred_element_type=jnp.float32)        # [8, TB]
    h1 = jnp.tanh(h1 + b1_ref[...])
    enc = jnp.dot(w2_ref[...], h1, preferred_element_type=jnp.float32) + b2_ref[...]   # [3, TB]
    encT_ref[...] = enc.astype(encT_ref.dtype)

    # ---- decoder: Linear(3,8) -> Tanh -> Linear(8,16) -> Sigmoid ----
    h2 = jnp.dot(w3_ref[...], enc, preferred_element_type=jnp.float32)      # [8, TB]
    h2 = jnp.tanh(h2 + b3_ref[...])
    d = jnp.dot(w4_ref[...], h2, preferred_element_type=jnp.float32) + b4_ref[...]     # [16, TB]
    decT_ref[...] = jax.nn.sigmoid(d).astype(decT_ref.dtype)


def _round_up(a, m):
    return (a + m - 1) // m * m


def _pick_tile(B, tile_b):
    """Choose the lane (batch) tile size."""
    req = max(LANE, min(_round_up(tile_b, LANE), MAX_TILE_B))
    if B <= LANE:
        # Single full-extent block: lane dim equals the full array dim, no padding needed.
        return B
    # Ensure >=2 grid steps whenever possible so both v7x TensorCores get work.
    half = _round_up(-(-B // 2), LANE)
    return min(req, half)


def autoencoder_forward_t(xT, params, *, tile_b=32768, out_dtype=jnp.float32):
    """Lane-dense entry point.

    xT: [16, B] float32.  Returns (encT [3, B], decT [16, B]).
    Callers that can keep activations in [features, batch] layout should use this
    directly — it performs no HBM relayout passes outside the kernel.
    """
    F, B = xT.shape
    assert F == 16

    tb = _pick_tile(B, tile_b)
    grid = (pl.cdiv(B, tb),)   # ragged tail block is masked by Pallas

    w1, b1, w2, b2, w3, b3, w4, b4 = (
        params["w1"], params["b1"], params["w2"], params["b2"],
        params["w3"], params["b3"], params["w4"], params["b4"],
    )

    def resident_spec(arr):
        # Full-array block with a constant block index -> stays resident in VMEM
        # across grid steps (no re-DMA of the <2 KiB of weights per tile).
        return pl.BlockSpec(arr.shape, lambda i: (0, 0))

    in_specs = [pl.BlockSpec((F, tb), lambda i: (0, i))]     # x^T, batch tiled on lanes
    in_specs += [resident_spec(a) for a in (w1, b1, w2, b2, w3, b3, w4, b4)]
    out_specs = (
        pl.BlockSpec((3, tb), lambda i: (0, i)),             # enc^T (lane-dense store)
        pl.BlockSpec((16, tb), lambda i: (0, i)),            # dec^T (lane-dense store)
    )
    # NOTE: if a profile shows exposed input DMA at large tiles, the next knob is
    # pipeline_mode=pl.Buffered(3) on in_specs[0] (costs one extra input tile of VMEM).

    encT, decT = pl.pallas_call(
        autoencoder_kernel,
        grid=grid,
        in_specs=in_specs,
        out_specs=out_specs,
        out_shape=(
            jax.ShapeDtypeStruct((3, B), out_dtype),
            jax.ShapeDtypeStruct((16, B), out_dtype),
        ),
        compiler_params=pltpu.CompilerParams(
            dimension_semantics=("parallel",),        # shard batch tiles across TensorCores
            vmem_limit_bytes=32 * 1024 * 1024,        # headroom over v5e's 16 MiB default
        ),
    )(xT, w1, b1, w2, b2, w3, b3, w4, b4)
    return encT, decT


def autoencoder_forward(x, params, *, tile_b=32768, out_dtype=jnp.float32):
    """PyTorch-contract entry point: x [B, 16] -> (encoded [B, 3], decoded [B, 16])."""
    B, F = x.shape
    assert F == 16
    encT, decT = autoencoder_forward_t(x.T, params, tile_b=tile_b, out_dtype=out_dtype)
    return encT.T, decT.T


def init_params(key):
    """Deterministic parameter init mimicking nn.Linear.

    Weights are stored PyTorch-style (out, in); biases as (out, 1) so they broadcast
    across the lane (batch) axis inside the kernel.
    """
    ks = jax.random.split(key, 8)

    def linear(kw, kb, fan_in, fan_out):
        bound = 1.0 / jnp.sqrt(jnp.float32(fan_in))
        w = jax.random.uniform(kw, (fan_out, fan_in), jnp.float32, -bound, bound)
        b = jax.random.uniform(kb, (fan_out, 1), jnp.float32, -bound, bound)
        return w, b

    w1, b1 = linear(ks[0], ks[1], 16, 8)   # encoder Linear(16, 8)
    w2, b2 = linear(ks[2], ks[3], 8, 3)    # encoder Linear(8, 3)
    w3, b3 = linear(ks[4], ks[5], 3, 8)    # decoder Linear(3, 8)
    w4, b4 = linear(ks[6], ks[7], 8, 16)   # decoder Linear(8, 16)
    return dict(w1=w1, b1=b1, w2=w2, b2=b2, w3=w3, b3=b3, w4=w4, b4=b4)


def reference_forward(x, p):
    h1 = jnp.tanh(x @ p["w1"].T + p["b1"].T)
    enc = h1 @ p["w2"].T + p["b2"].T
    h2 = jnp.tanh(enc @ p["w3"].T + p["b3"].T)
    dec = jax.nn.sigmoid(h2 @ p["w4"].T + p["b4"].T)
    return enc, dec


if __name__ == "__main__":
    key = jax.random.PRNGKey(0)
    k_x, k_p, k_x2, k_x3 = jax.random.split(key, 4)
    params = init_params(k_p)

    # Small batch (matches the PyTorch module's flattened 4*4=16 features per row):
    # exercises the single full-extent block path (no padding, lane dim == B).
    B = 8
    x = jax.random.uniform(k_x, (B, 16), jnp.float32)
    enc, dec = jax.block_until_ready(autoencoder_forward(x, params))
    enc_ref, dec_ref = reference_forward(x, params)
    assert enc.shape == (B, 3) and dec.shape == (B, 16)
    assert jnp.allclose(enc, enc_ref, atol=1e-5, rtol=1e-5)
    assert jnp.allclose(dec, dec_ref, atol=1e-5, rtol=1e-5)

    # Multi-step grid + ragged tail (B not a multiple of the 128-lane tile, no zero-pad).
    B2 = 300
    x2 = jax.random.uniform(k_x2, (B2, 16), jnp.float32)
    enc2, dec2 = jax.block_until_ready(autoencoder_forward(x2, params, tile_b=128))
    enc2_ref, dec2_ref = reference_forward(x2, params)
    assert enc2.shape == (B2, 3) and dec2.shape == (B2, 16)
    assert jnp.allclose(enc2, enc2_ref, atol=1e-5, rtol=1e-5)
    assert jnp.allclose(dec2, dec2_ref, atol=1e-5, rtol=1e-5)

    # Default tile selection path (tile capped at ceil(B/2) -> 2 grid steps) via the
    # lane-dense [features, batch] entry point (no wrapper relayout at all).
    B3 = 1000
    x3 = jax.random.uniform(k_x3, (B3, 16), jnp.float32)
    enc3T, dec3T = jax.block_until_ready(autoencoder_forward_t(x3.T, params))
    enc3_ref, dec3_ref = reference_forward(x3, params)
    assert enc3T.shape == (3, B3) and dec3T.shape == (16, B3)
    assert jnp.allclose(enc3T.T, enc3_ref, atol=1e-5, rtol=1e-5)
    assert jnp.allclose(dec3T.T, dec3_ref, atol=1e-5, rtol=1e-5)

    print("KERNEL_OK")
</pallas_src>

<mosaic_0001>
module attributes {stable_mosaic.version = 11 : i64} {
  func.func @autoencoder_kernel(%arg0: i32, %arg1: memref<16x8xf32, #tpu.memory_space<vmem>>, %arg2: memref<8x16xf32, #tpu.memory_space<vmem>>, %arg3: memref<8x1xf32, #tpu.memory_space<vmem>>, %arg4: memref<3x8xf32, #tpu.memory_space<vmem>>, %arg5: memref<3x1xf32, #tpu.memory_space<vmem>>, %arg6: memref<8x3xf32, #tpu.memory_space<vmem>>, %arg7: memref<8x1xf32, #tpu.memory_space<vmem>>, %arg8: memref<16x8xf32, #tpu.memory_space<vmem>>, %arg9: memref<16x1xf32, #tpu.memory_space<vmem>>, %arg10: memref<3x8xf32, #tpu.memory_space<vmem>>, %arg11: memref<16x8xf32, #tpu.memory_space<vmem>>) attributes {dimension_semantics = [#tpu.dimension_semantics<parallel>], iteration_bounds = array<i64: 1>, scalar_prefetch = 0 : i64, scratch_operands = 0 : i64, tpu.core_type = #tpu.core_type<tc>, window_params = [{transform_indices = @transform_0, window_bounds = array<i64: 16, 8>}, {pipeline_mode = #tpu.pipeline_mode<synchronous>, transform_indices = @transform_1, window_bounds = array<i64: 8, 16>}, {pipeline_mode = #tpu.pipeline_mode<synchronous>, transform_indices = @transform_2, window_bounds = array<i64: 8, 1>}, {pipeline_mode = #tpu.pipeline_mode<synchronous>, transform_indices = @transform_3, window_bounds = array<i64: 3, 8>}, {pipeline_mode = #tpu.pipeline_mode<synchronous>, transform_indices = @transform_4, window_bounds = array<i64: 3, 1>}, {pipeline_mode = #tpu.pipeline_mode<synchronous>, transform_indices = @transform_5, window_bounds = array<i64: 8, 3>}, {pipeline_mode = #tpu.pipeline_mode<synchronous>, transform_indices = @transform_6, window_bounds = array<i64: 8, 1>}, {pipeline_mode = #tpu.pipeline_mode<synchronous>, transform_indices = @transform_7, window_bounds = array<i64: 16, 8>}, {pipeline_mode = #tpu.pipeline_mode<synchronous>, transform_indices = @transform_8, window_bounds = array<i64: 16, 1>}, {transform_indices = @transform_9, window_bounds = array<i64: 3, 8>}, {transform_indices = @transform_10, window_bounds = array<i64: 16, 8>}]} {
    %c0 = arith.constant 0 : index
    %c0_0 = arith.constant 0 : index
    %0 = vector.load %arg1[%c0, %c0_0] : memref<16x8xf32, #tpu.memory_space<vmem>>, vector<16x8xf32>
    %c0_1 = arith.constant 0 : index
    %c0_2 = arith.constant 0 : index
    %1 = vector.load %arg2[%c0_1, %c0_2] : memref<8x16xf32, #tpu.memory_space<vmem>>, vector<8x16xf32>
    %cst = arith.constant dense<0.000000e+00> : vector<8x8xf32>
    %2 = tpu.matmul %1, %0, %cst {dimension_numbers = #tpu.dot_dimension_numbers<[1], [0], [0], [1], [0, 0, 1, 1], [], []>} : vector<8x16xf32>, vector<16x8xf32>, vector<8x8xf32> -> vector<8x8xf32>
    %c0_3 = arith.constant 0 : index
    %c0_4 = arith.constant 0 : index
    %3 = vector.load %arg3[%c0_3, %c0_4] : memref<8x1xf32, #tpu.memory_space<vmem>>, vector<8x1xf32>
    %4 = vector.broadcast %3 : vector<8x1xf32> to vector<8x8xf32>
    %5 = arith.addf %2, %4 : vector<8x8xf32>
    %6 = math.tanh %5 : vector<8x8xf32>
    %c0_5 = arith.constant 0 : index
    %c0_6 = arith.constant 0 : index
    %7 = vector.load %arg4[%c0_5, %c0_6] : memref<3x8xf32, #tpu.memory_space<vmem>>, vector<3x8xf32>
    %cst_7 = arith.constant dense<0.000000e+00> : vector<3x8xf32>
    %8 = tpu.matmul %7, %6, %cst_7 {dimension_numbers = #tpu.dot_dimension_numbers<[1], [0], [0], [1], [0, 0, 1, 1], [], []>} : vector<3x8xf32>, vector<8x8xf32>, vector<3x8xf32> -> vector<3x8xf32>
    %c0_8 = arith.constant 0 : index
    %c0_9 = arith.constant 0 : index
    %9 = vector.load %arg5[%c0_8, %c0_9] : memref<3x1xf32, #tpu.memory_space<vmem>>, vector<3x1xf32>
    %10 = vector.broadcast %9 : vector<3x1xf32> to vector<3x8xf32>
    %11 = arith.addf %8, %10 : vector<3x8xf32>
    %c0_10 = arith.constant 0 : index
    %c0_11 = arith.constant 0 : index
    %12 = vector.load %arg10[%c0_10, %c0_11] : memref<3x8xf32, #tpu.memory_space<vmem>>, vector<3x8xf32>
    tpu.vector_store %arg10[%c0_10, %c0_11], %11 {strides = array<i32>} : memref<3x8xf32, #tpu.memory_space<vmem>>, vector<3x8xf32>,
    %c0_12 = arith.constant 0 : index
    %c0_13 = arith.constant 0 : index
    %13 = vector.load %arg6[%c0_12, %c0_13] : memref<8x3xf32, #tpu.memory_space<vmem>>, vector<8x3xf32>
    %cst_14 = arith.constant dense<0.000000e+00> : vector<8x8xf32>
    %14 = tpu.matmul %13, %11, %cst_14 {dimension_numbers = #tpu.dot_dimension_numbers<[1], [0], [0], [1], [0, 0, 1, 1], [], []>} : vector<8x3xf32>, vector<3x8xf32>, vector<8x8xf32> -> vector<8x8xf32>
    %c0_15 = arith.constant 0 : index
    %c0_16 = arith.constant 0 : index
    %15 = vector.load %arg7[%c0_15, %c0_16] : memref<8x1xf32, #tpu.memory_space<vmem>>, vector<8x1xf32>
    %16 = vector.broadcast %15 : vector<8x1xf32> to vector<8x8xf32>
    %17 = arith.addf %14, %16 : vector<8x8xf32>
    %18 = math.tanh %17 : vector<8x8xf32>
    %c0_17 = arith.constant 0 : index
    %c0_18 = arith.constant 0 : index
    %19 = vector.load %arg8[%c0_17, %c0_18] : memref<16x8xf32, #tpu.memory_space<vmem>>, vector<16x8xf32>
    %cst_19 = arith.constant dense<0.000000e+00> : vector<16x8xf32>
    %20 = tpu.matmul %19, %18, %cst_19 {dimension_numbers = #tpu.dot_dimension_numbers<[1], [0], [0], [1], [0, 0, 1, 1], [], []>} : vector<16x8xf32>, vector<8x8xf32>, vector<16x8xf32> -> vector<16x8xf32>
    %c0_20 = arith.constant 0 : index
    %c0_21 = arith.constant 0 : index
    %21 = vector.load %arg9[%c0_20, %c0_21] : memref<16x1xf32, #tpu.memory_space<vmem>>, vector<16x1xf32>
    %22 = vector.broadcast %21 : vector<16x1xf32> to vector<16x8xf32>
    %23 = arith.addf %20, %22 : vector<16x8xf32>
    %24 = arith.negf %23 : vector<16x8xf32>
    %25 = math.exp %24 : vector<16x8xf32>
    %cst_22 = arith.constant 1.000000e+00 : f32
    %26 = vector.broadcast %cst_22 : f32 to vector<16x8xf32>
    %27 = arith.addf %26, %25 : vector<16x8xf32>
    %28 = arith.divf %26, %27 : vector<16x8xf32>
    %c0_23 = arith.constant 0 : index
    %c0_24 = arith.constant 0 : index
    %29 = vector.load %arg11[%c0_23, %c0_24] : memref<16x8xf32, #tpu.memory_space<vmem>>, vector<16x8xf32>
    tpu.vector_store %arg11[%c0_23, %c0_24], %28 {strides = array<i32>} : memref<16x8xf32, #tpu.memory_space<vmem>>, vector<16x8xf32>,
    return
  }
  func.func @transform_0(%arg0: i32) -> (i32, i32) {
    %c0_i32 = arith.constant 0 : i32
    %c0_i32_0 = arith.constant 0 : i32
    return %c0_i32, %arg0 : i32, i32
  }
  func.func @transform_1(%arg0: i32) -> (i32, i32) {
    %c0_i32 = arith.constant 0 : i32
    %c0_i32_0 = arith.constant 0 : i32
    %c0_i32_1 = arith.constant 0 : i32
    return %c0_i32, %c0_i32_0 : i32, i32
  }
  func.func @transform_2(%arg0: i32) -> (i32, i32) {
    %c0_i32 = arith.constant 0 : i32
    %c0_i32_0 = arith.constant 0 : i32
    %c0_i32_1 = arith.constant 0 : i32
    return %c0_i32, %c0_i32_0 : i32, i32
  }
  func.func @transform_3(%arg0: i32) -> (i32, i32) {
    %c0_i32 = arith.constant 0 : i32
    %c0_i32_0 = arith.constant 0 : i32
    %c0_i32_1 = arith.constant 0 : i32
    return %c0_i32, %c0_i32_0 : i32, i32
  }
  func.func @transform_4(%arg0: i32) -> (i32, i32) {
    %c0_i32 = arith.constant 0 : i32
    %c0_i32_0 = arith.constant 0 : i32
    %c0_i32_1 = arith.constant 0 : i32
    return %c0_i32, %c0_i32_0 : i32, i32
  }
  func.func @transform_5(%arg0: i32) -> (i32, i32) {
    %c0_i32 = arith.constant 0 : i32
    %c0_i32_0 = arith.constant 0 : i32
    %c0_i32_1 = arith.constant 0 : i32
    return %c0_i32, %c0_i32_0 : i32, i32
  }
  func.func @transform_6(%arg0: i32) -> (i32, i32) {
    %c0_i32 = arith.constant 0 : i32
    %c0_i32_0 = arith.constant 0 : i32
    %c0_i32_1 = arith.constant 0 : i32
    return %c0_i32, %c0_i32_0 : i32, i32
  }
  func.func @transform_7(%arg0: i32) -> (i32, i32) {
    %c0_i32 = arith.constant 0 : i32
    %c0_i32_0 = arith.constant 0 : i32
    %c0_i32_1 = arith.constant 0 : i32
    return %c0_i32, %c0_i32_0 : i32, i32
  }
  func.func @transform_8(%arg0: i32) -> (i32, i32) {
    %c0_i32 = arith.constant 0 : i32
    %c0_i32_0 = arith.constant 0 : i32
    %c0_i32_1 = arith.constant 0 : i32
    return %c0_i32, %c0_i32_0 : i32, i32
  }
  func.func @transform_9(%arg0: i32) -> (i32, i32) {
    %c0_i32 = arith.constant 0 : i32
    %c0_i32_0 = arith.constant 0 : i32
    return %c0_i32, %arg0 : i32, i32
  }
  func.func @transform_10(%arg0: i32) -> (i32, i32) {
    %c0_i32 = arith.constant 0 : i32
    %c0_i32_0 = arith.constant 0 : i32
    return %c0_i32, %arg0 : i32, i32
  }
}

</mosaic_0001>

<llo_original>
// kernel: tpu_custom_call.1
$region0: #{tpu_custom_call.1}
  #allocation0 [shape = 'u32[]', space=smem, size = 0x4, offset = 0x4, fixed_abs, tag = 'smem constant byte address 0x4 - core index']
  #allocation1 [shape = 'u32[144,128]{1,0:T(1,128)}', space=vmem, size = 0x12000, scoped, tag = 'internal scratch']
  %s0 = inlined_call_operand.vmem [shape: f32[16,8], index: 0, kind: input, shape index: {}]
  %s1 = inlined_call_operand.vmem [shape: f32[8,16], index: 1, kind: input, shape index: {}]
  %s2 = inlined_call_operand.vmem [shape: f32[8,1], index: 2, kind: input, shape index: {}]
  %s3 = inlined_call_operand.vmem [shape: f32[3,8], index: 3, kind: input, shape index: {}]
  %s4 = inlined_call_operand.vmem [shape: f32[3,1], index: 4, kind: input, shape index: {}]
  %s5 = inlined_call_operand.vmem [shape: f32[8,3], index: 5, kind: input, shape index: {}]
  %s6 = inlined_call_operand.vmem [shape: f32[8,1], index: 6, kind: input, shape index: {}]
  %s7 = inlined_call_operand.vmem [shape: f32[16,8], index: 7, kind: input, shape index: {}]
  %s8 = inlined_call_operand.vmem [shape: f32[16,1], index: 8, kind: input, shape index: {}]
  %s9 = inlined_call_operand.hbm [shape: f32[3,8], index: 9, kind: output, shape index: {0}]
  %s10 = inlined_call_operand.vmem [shape: f32[16,8], index: 10, kind: output, shape index: {1}]
  %11 = xla_tuple %s9, %s10
  %s12 = sld [smem:[#allocation0]]
  $region54: #{tpu_custom_call.1} parent=0
    _
  %s14 = ssub.s32 1, %s12
  %s15 = scalar_select 0, %s14, %s12
  $region1: #{tpu_custom_call.1} parent=0
    #allocation2 [shape = 'u8[2048]{0}', space=vmem, size = 0x800, scoped, tag = 'output window, operand 0, single buffered']
    #allocation3 [shape = 's32[1]{0}', space=sflag, size = 0x4, scoped, tag = 'scoped memory for tpu_custom_call.1']
    %16 = vsyncpa [#allocation3], 0
    // Predicated region
    $region2: #{tpu_custom_call.1} parent=1 // pred_check
      _
    $region3: #{tpu_custom_call.1} parent=1 // pred_check_branch
      %18 = sbr.rel (0) target = $region5
    $region4: #{tpu_custom_call.1} parent=1 // pred_region
      _
    $region5: #{tpu_custom_call.1} parent=1 // pred_fallthru
      _
    // Predicated region
    $region6: #{tpu_custom_call.1} parent=1 // pred_check
      _
    $region7: #{tpu_custom_call.1} parent=1 // pred_check_branch
      %20 = sbr.rel (0) target = $region9
    $region8: #{tpu_custom_call.1} parent=1 // pred_region
      _
    $region9: #{tpu_custom_call.1} parent=1 // pred_fallthru
      _
    // Predicated region
    $region10: #{tpu_custom_call.1} parent=1 // pred_check
      _
    $region11: #{tpu_custom_call.1} parent=1 // pred_check_branch
      %22 = sbr.rel (0) target = $region13
    $region12: #{tpu_custom_call.1} parent=1 // pred_region
      _
    $region13: #{tpu_custom_call.1} parent=1 // pred_fallthru
      _
    // Predicated region
    $region14: #{tpu_custom_call.1} parent=1 // pred_check
      _
    $region15: #{tpu_custom_call.1} parent=1 // pred_check_branch
      %24 = sbr.rel (0) target = $region17
    $region16: #{tpu_custom_call.1} parent=1 // pred_region
      _
    $region17: #{tpu_custom_call.1} parent=1 // pred_fallthru
      _
    // Predicated region
    $region18: #{tpu_custom_call.1} parent=1 // pred_check
      _
    $region19: #{tpu_custom_call.1} parent=1 // pred_check_branch
      %26 = sbr.rel (0) target = $region21
    $region20: #{tpu_custom_call.1} parent=1 // pred_region
      _
    $region21: #{tpu_custom_call.1} parent=1 // pred_fallthru
      _
    // Predicated region
    $region22: #{tpu_custom_call.1} parent=1 // pred_check
      _
    $region23: #{tpu_custom_call.1} parent=1 // pred_check_branch
      %28 = sbr.rel (0) target = $region25
    $region24: #{tpu_custom_call.1} parent=1 // pred_region
      _
    $region25: #{tpu_custom_call.1} parent=1 // pred_fallthru
      _
    // Predicated region
    $region26: #{tpu_custom_call.1} parent=1 // pred_check
      _
    $region27: #{tpu_custom_call.1} parent=1 // pred_check_branch
      %30 = sbr.rel (0) target = $region29
    $region28: #{tpu_custom_call.1} parent=1 // pred_region
      _
    $region29: #{tpu_custom_call.1} parent=1 // pred_fallthru
      _
    // Predicated region
    $region30: #{tpu_custom_call.1} parent=1 // pred_check
      _
    $region31: #{tpu_custom_call.1} parent=1 // pred_check_branch
      %32 = sbr.rel (0) target = $region33
    $region32: #{tpu_custom_call.1} parent=1 // pred_region
      _
    $region33: #{tpu_custom_call.1} parent=1 // pred_fallthru
      _
    // Predicated region
    $region34: #{tpu_custom_call.1} parent=1 // pred_check
      _
    $region35: #{tpu_custom_call.1} parent=1 // pred_check_branch
      %34 = sbr.rel (0) target = $region37
    $region36: #{tpu_custom_call.1} parent=1 // pred_region
      _
    $region37: #{tpu_custom_call.1} parent=1 // pred_fallthru
      _
    %v35 = vld [vmem:[%s0] sm:$0xff]
    %v36 = vld [vmem:[%s0 + $0x8] sm:$0xff]
    %v37 = vld [vmem:[%s1] sm:$0xff]
    %v38 = vld [vmem:[%s2] sm:$0xff]
    %40 = vset.pattern.permute.xlu0 0
    %41 = vperm.xlu0 %40, %v38
    %v42 = vpop.permute.xlu0 %41
    %vm44 = vcmask 130048
    %v46 = vsel %vm44, %v37, 0
    %48 = vmatprep.subr.mxu0 0.0
    %49 = vmatpush1.msra.mxu0 %v35
    %50 = vmatprep.subr.mxu0 0.0
    %51 = vmatpush1.msra.mxu0 %v36
    %52 = vmatprep.subr.mxu0 0.0
    %53 = vmatpush1.msra.mxu0 0.0
    %54 = vmatprep.subr.mxu0 0.0
    %55 = vmatpush1.msra.mxu0 0.0
    %56 = vmatprep.subr.mxu0 0.0
    %57 = vmatpush1.msra.mxu0 0.0
    %58 = vmatprep.subr.mxu0 0.0
    %59 = vmatpush1.msra.mxu0 0.0
    %60 = vmatprep.subr.mxu0 0.0
    %61 = vmatpush1.msra.mxu0 0.0
    %62 = vmatprep.subr.mxu0 0.0
    %63 = vmatpush1.msra.mxu0 0.0
    %64 = vmatprep.subr.mxu0 0.0
    %65 = vmatpush1.msra.mxu0 0.0
    %66 = vmatprep.subr.mxu0 0.0
    %67 = vmatpush1.msra.mxu0 0.0
    %68 = vmatprep.subr.mxu0 0.0
    %69 = vmatpush1.msra.mxu0 0.0
    %70 = vmatprep.subr.mxu0 0.0
    %71 = vmatpush1.msra.mxu0 0.0
    %72 = vmatprep.subr.mxu0 0.0
    %73 = vmatpush1.msra.mxu0 0.0
    %74 = vmatprep.subr.mxu0 0.0
    %75 = vmatpush1.msra.mxu0 0.0
    %76 = vmatprep.subr.mxu0 0.0
    %77 = vmatpush1.msra.mxu0 0.0
    %78 = vmatprep.subr.mxu0 0.0
    %79 = vmatpush1.msra.mxu0 0.0
    %80 = vmatprep.subr.mxu0 0.0
    %81 = vmatpush1.msra.mxu0 0.0
    %82 = vmatprep.subr.mxu0 0.0
    %83 = vmatpush1.msra.mxu0 0.0
    %84 = vmatprep.subr.mxu0 0.0
    %85 = vmatpush1.msra.mxu0 0.0
    %86 = vmatprep.subr.mxu0 0.0
    %87 = vmatpush1.msra.mxu0 0.0
    %88 = vmatprep.subr.mxu0 0.0
    %89 = vmatpush1.msra.mxu0 0.0
    %90 = vmatprep.subr.mxu0 0.0
    %91 = vmatpush1.msra.mxu0 0.0
    %92 = vmatprep.subr.mxu0 0.0
    %93 = vmatpush1.msra.mxu0 0.0
    %94 = vmatprep.subr.mxu0 0.0
    %95 = vmatpush1.msra.mxu0 0.0
    %96 = vmatprep.subr.mxu0 0.0
    %97 = vmatpush1.msra.mxu0 0.0
    %98 = vmatprep.subr.mxu0 0.0
    %99 = vmatpush1.msra.mxu0 0.0
    %100 = vmatprep.subr.mxu0 0.0
    %101 = vmatpush1.msra.mxu0 0.0
    %102 = vmatprep.subr.mxu0 0.0
    %103 = vmatpush1.msra.mxu0 0.0
    %104 = vmatprep.subr.mxu0 0.0
    %105 = vmatpush1.msra.mxu0 0.0
    %106 = vmatprep.subr.mxu0 0.0
    %107 = vmatpush1.msra.mxu0 0.0
    %108 = vmatprep.subr.mxu0 0.0
    %109 = vmatpush1.msra.mxu0 0.0
    %110 = vmatprep.subr.mxu0 0.0
    %111 = vmatpush1.msra.mxu0 0.0
    %112 = vmatprep.mubr.f32.mxu0 0.0
    %113 = vmatmul.mubr.f32.gmra.mrb[0].mxu0 %v46
    %v114 = vpop.f32.mrb[0].mxu0
    %v115 = vadd.f32 %v42, %v114
    %v116 = vpop.f32.mrb[0].mxu0
    %117 = vdwg.mxu0
    %v118 = vtanh.pop %v115
    %v119 = vld [vmem:[%s3] sm:$0x7]
    %v120 = vld [vmem:[%s4] sm:$0x7]
    %122 = vset.pattern.permute.xlu0 0
    %123 = vperm.xlu0 %122, %v120
    %v124 = vpop.permute.xlu0 %123
    %vm126 = vcmask 64512
    %v128 = vsel %vm126, %v119, 0
    %130 = vmatprep.subr.mxu0 0.0
    %131 = vmatpush1.msra.mxu0 %v118
    %132 = vmatprep.subr.mxu0 0.0
    %133 = vmatpush1.msra.mxu0 0.0
    %134 = vmatprep.subr.mxu0 0.0
    %135 = vmatpush1.msra.mxu0 0.0
    %136 = vmatprep.subr.mxu0 0.0
    %137 = vmatpush1.msra.mxu0 0.0
    %138 = vmatprep.subr.mxu0 0.0
    %139 = vmatpush1.msra.mxu0 0.0
    %140 = vmatprep.subr.mxu0 0.0
    %141 = vmatpush1.msra.mxu0 0.0
    %142 = vmatprep.subr.mxu0 0.0
    %143 = vmatpush1.msra.mxu0 0.0
    %144 = vmatprep.subr.mxu0 0.0
    %145 = vmatpush1.msra.mxu0 0.0
    %146 = vmatprep.subr.mxu0 0.0
    %147 = vmatpush1.msra.mxu0 0.0
    %148 = vmatprep.subr.mxu0 0.0
    %149 = vmatpush1.msra.mxu0 0.0
    %150 = vmatprep.subr.mxu0 0.0
    %151 = vmatpush1.msra.mxu0 0.0
    %152 = vmatprep.subr.mxu0 0.0
    %153 = vmatpush1.msra.mxu0 0.0
    %154 = vmatprep.subr.mxu0 0.0
    %155 = vmatpush1.msra.mxu0 0.0
    %156 = vmatprep.subr.mxu0 0.0
    %157 = vmatpush1.msra.mxu0 0.0
    %158 = vmatprep.subr.mxu0 0.0
    %159 = vmatpush1.msra.mxu0 0.0
    %160 = vmatprep.subr.mxu0 0.0
    %161 = vmatpush1.msra.mxu0 0.0
    %162 = vmatprep.subr.mxu0 0.0
    %163 = vmatpush1.msra.mxu0 0.0
    %164 = vmatprep.subr.mxu0 0.0
    %165 = vmatpush1.msra.mxu0 0.0
    %166 = vmatprep.subr.mxu0 0.0
    %167 = vmatpush1.msra.mxu0 0.0
    %168 = vmatprep.subr.mxu0 0.0
    %169 = vmatpush1.msra.mxu0 0.0
    %170 = vmatprep.subr.mxu0 0.0
    %171 = vmatpush1.msra.mxu0 0.0
    %172 = vmatprep.subr.mxu0 0.0
    %173 = vmatpush1.msra.mxu0 0.0
    %174 = vmatprep.subr.mxu0 0.0
    %175 = vmatpush1.msra.mxu0 0.0
    %176 = vmatprep.subr.mxu0 0.0
    %177 = vmatpush1.msra.mxu0 0.0
    %178 = vmatprep.subr.mxu0 0.0
    %179 = vmatpush1.msra.mxu0 0.0
    %180 = vmatprep.subr.mxu0 0.0
    %181 = vmatpush1.msra.mxu0 0.0
    %182 = vmatprep.subr.mxu0 0.0
    %183 = vmatpush1.msra.mxu0 0.0
    %184 = vmatprep.subr.mxu0 0.0
    %185 = vmatpush1.msra.mxu0 0.0
    %186 = vmatprep.subr.mxu0 0.0
    %187 = vmatpush1.msra.mxu0 0.0
    %188 = vmatprep.subr.mxu0 0.0
    %189 = vmatpush1.msra.mxu0 0.0
    %190 = vmatprep.subr.mxu0 0.0
    %191 = vmatpush1.msra.mxu0 0.0
    %192 = vmatprep.subr.mxu0 0.0
    %193 = vmatpush1.msra.mxu0 0.0
    %194 = vmatprep.mubr.f32.mxu0 0.0
    %195 = vmatmul.mubr.f32.gmra.mrb[0].mxu0 %v128
    %v196 = vpop.f32.mrb[0].mxu0
    %v197 = vadd.f32 %v124, %v196
    %v198 = vpop.f32.mrb[0].mxu0
    %199 = vdwg.mxu0
    %vm200 = vcmask 59392
    %201 = vst.msk [vmem:[#allocation2] sm:$0x7] %vm200, %v197
    %v202 = vld [vmem:[%s5] sm:$0xff]
    %v203 = vld [vmem:[%s6] sm:$0xff]
    %205 = vset.pattern.permute.xlu0 0
    %206 = vperm.xlu0 %205, %v203
    %v207 = vpop.permute.xlu0 %206
    %vm209 = vcmask 23552
    %v211 = vsel %vm209, %v202, 0
    %vm213 = vcmask 1042432
    %v215 = vsel %vm213, %v197, 0
    %217 = vmatprep.subr.mxu0 0.0
    %218 = vmatpush1.msra.mxu0 %v215
    %219 = vmatprep.subr.mxu0 0.0
    %220 = vmatpush1.msra.mxu0 0.0
    %221 = vmatprep.subr.mxu0 0.0
    %222 = vmatpush1.msra.mxu0 0.0
    %223 = vmatprep.subr.mxu0 0.0
    %224 = vmatpush1.msra.mxu0 0.0
    %225 = vmatprep.subr.mxu0 0.0
    %226 = vmatpush1.msra.mxu0 0.0
    %227 = vmatprep.subr.mxu0 0.0
    %228 = vmatpush1.msra.mxu0 0.0
    %229 = vmatprep.subr.mxu0 0.0
    %230 = vmatpush1.msra.mxu0 0.0
    %231 = vmatprep.subr.mxu0 0.0
    %232 = vmatpush1.msra.mxu0 0.0
    %233 = vmatprep.subr.mxu0 0.0
    %234 = vmatpush1.msra.mxu0 0.0
    %235 = vmatprep.subr.mxu0 0.0
    %236 = vmatpush1.msra.mxu0 0.0
    %237 = vmatprep.subr.mxu0 0.0
    %238 = vmatpush1.msra.mxu0 0.0
    %239 = vmatprep.subr.mxu0 0.0
    %240 = vmatpush1.msra.mxu0 0.0
    %241 = vmatprep.subr.mxu0 0.0
    %242 = vmatpush1.msra.mxu0 0.0
    %243 = vmatprep.subr.mxu0 0.0
    %244 = vmatpush1.msra.mxu0 0.0
    %245 = vmatprep.subr.mxu0 0.0
    %246 = vmatpush1.msra.mxu0 0.0
    %247 = vmatprep.subr.mxu0 0.0
    %248 = vmatpush1.msra.mxu0 0.0
    %249 = vmatprep.subr.mxu0 0.0
    %250 = vmatpush1.msra.mxu0 0.0
    %251 = vmatprep.subr.mxu0 0.0
    %252 = vmatpush1.msra.mxu0 0.0
    %253 = vmatprep.subr.mxu0 0.0
    %254 = vmatpush1.msra.mxu0 0.0
    %255 = vmatprep.subr.mxu0 0.0
    %256 = vmatpush1.msra.mxu0 0.0
    %257 = vmatprep.subr.mxu0 0.0
    %258 = vmatpush1.msra.mxu0 0.0
    %259 = vmatprep.subr.mxu0 0.0
    %260 = vmatpush1.msra.mxu0 0.0
    %261 = vmatprep.subr.mxu0 0.0
    %262 = vmatpush1.msra.mxu0 0.0
    %263 = vmatprep.subr.mxu0 0.0
    %264 = vmatpush1.msra.mxu0 0.0
    %265 = vmatprep.subr.mxu0 0.0
    %266 = vmatpush1.msra.mxu0 0.0
    %267 = vmatprep.subr.mxu0 0.0
    %268 = vmatpush1.msra.mxu0 0.0
    %269 = vmatprep.subr.mxu0 0.0
    %270 = vmatpush1.msra.mxu0 0.0
    %271 = vmatprep.subr.mxu0 0.0
    %272 = vmatpush1.msra.mxu0 0.0
    %273 = vmatprep.subr.mxu0 0.0
    %274 = vmatpush1.msra.mxu0 0.0
    %275 = vmatprep.subr.mxu0 0.0
    %276 = vmatpush1.msra.mxu0 0.0
    %277 = vmatprep.subr.mxu0 0.0
    %278 = vmatpush1.msra.mxu0 0.0
    %279 = vmatprep.subr.mxu0 0.0
    %280 = vmatpush1.msra.mxu0 0.0
    %281 = vmatprep.mubr.f32.mxu0 0.0
    %282 = vmatmul.mubr.f32.gmra.mrb[0].mxu0 %v211
    %v283 = vpop.f32.mrb[0].mxu0
    %v284 = vadd.f32 %v207, %v283
    %v285 = vpop.f32.mrb[0].mxu0
    %286 = vdwg.mxu0
    %v287 = vtanh.pop %v284
    %v288 = vld [vmem:[%s7] sm:$0xff]
    %v289 = vld [vmem:[%s7 + $0x8] sm:$0xff]
    %v290 = vld [vmem:[%s8] sm:$0xff]
    %v291 = vld [vmem:[%s8 + $0x8] sm:$0xff]
    %293 = vset.pattern.permute.xlu0 0
    %294 = vperm.xlu0 %293, %v290
    %v295 = vpop.permute.xlu0 %294
    %298 = vset.pattern.permute.xlu0 0
    %299 = vperm.xlu0 %298, %v291
    %v300 = vpop.permute.xlu0 %299
    %v303 = vsel %vm126, %v288, 0
    %v306 = vsel %vm126, %v289, 0
    %308 = vmatprep.subr.mxu0 0.0
    %309 = vmatpush1.msra.mxu0 %v287
    %310 = vmatprep.subr.mxu0 0.0
    %311 = vmatpush1.msra.mxu0 0.0
    %312 = vmatprep.subr.mxu0 0.0
    %313 = vmatpush1.msra.mxu0 0.0
    %314 = vmatprep.subr.mxu0 0.0
    %315 = vmatpush1.msra.mxu0 0.0
    %316 = vmatprep.subr.mxu0 0.0
    %317 = vmatpush1.msra.mxu0 0.0
    %318 = vmatprep.subr.mxu0 0.0
    %319 = vmatpush1.msra.mxu0 0.0
    %320 = vmatprep.subr.mxu0 0.0
    %321 = vmatpush1.msra.mxu0 0.0
    %322 = vmatprep.subr.mxu0 0.0
    %323 = vmatpush1.msra.mxu0 0.0
    %324 = vmatprep.subr.mxu0 0.0
    %325 = vmatpush1.msra.mxu0 0.0
    %326 = vmatprep.subr.mxu0 0.0
    %327 = vmatpush1.msra.mxu0 0.0
    %328 = vmatprep.subr.mxu0 0.0
    %329 = vmatpush1.msra.mxu0 0.0
    %330 = vmatprep.subr.mxu0 0.0
    %331 = vmatpush1.msra.mxu0 0.0
    %332 = vmatprep.subr.mxu0 0.0
    %333 = vmatpush1.msra.mxu0 0.0
    %334 = vmatprep.subr.mxu0 0.0
    %335 = vmatpush1.msra.mxu0 0.0
    %336 = vmatprep.subr.mxu0 0.0
    %337 = vmatpush1.msra.mxu0 0.0
    %338 = vmatprep.subr.mxu0 0.0
    %339 = vmatpush1.msra.mxu0 0.0
    %340 = vmatprep.subr.mxu0 0.0
    %341 = vmatpush1.msra.mxu0 0.0
    %342 = vmatprep.subr.mxu0 0.0
    %343 = vmatpush1.msra.mxu0 0.0
    %344 = vmatprep.subr.mxu0 0.0
    %345 = vmatpush1.msra.mxu0 0.0
    %346 = vmatprep.subr.mxu0 0.0
    %347 = vmatpush1.msra.mxu0 0.0
    %348 = vmatprep.subr.mxu0 0.0
    %349 = vmatpush1.msra.mxu0 0.0
    %350 = vmatprep.subr.mxu0 0.0
    %351 = vmatpush1.msra.mxu0 0.0
    %352 = vmatprep.subr.mxu0 0.0
    %353 = vmatpush1.msra.mxu0 0.0
    %354 = vmatprep.subr.mxu0 0.0
    %355 = vmatpush1.msra.mxu0 0.0
    %356 = vmatprep.subr.mxu0 0.0
    %357 = vmatpush1.msra.mxu0 0.0
    %358 = vmatprep.subr.mxu0 0.0
    %359 = vmatpush1.msra.mxu0 0.0
    %360 = vmatprep.subr.mxu0 0.0
    %361 = vmatpush1.msra.mxu0 0.0
    %362 = vmatprep.subr.mxu0 0.0
    %363 = vmatpush1.msra.mxu0 0.0
    %364 = vmatprep.subr.mxu0 0.0
    %365 = vmatpush1.msra.mxu0 0.0
    %366 = vmatprep.subr.mxu0 0.0
    %367 = vmatpush1.msra.mxu0 0.0
    %368 = vmatprep.subr.mxu0 0.0
    %369 = vmatpush1.msra.mxu0 0.0
    %370 = vmatprep.subr.mxu0 0.0
    %371 = vmatpush1.msra.mxu0 0.0
    %372 = vmatprep.mubr.f32.mxu0 0.0
    %373 = vmatmul.mubr.f32.gmra.mrb[0].mxu0 %v303
    %v374 = vpop.f32.mrb[0].mxu0
    %v375 = vadd.f32 %v295, %v374
    %v376 = vpop.f32.mrb[0].mxu0
    %377 = vmatprep.mubr.f32.mxu0 0.0
    %378 = vmatmul.mubr.f32.gmra.mrb[0].mxu0 %v306
    %v379 = vpop.f32.mrb[0].mxu0
    %v380 = vadd.f32 %v300, %v379
    %v381 = vpop.f32.mrb[0].mxu0
    %382 = vdwg.mxu0
    %v383 = vxor.u32 %v375, 2147483648
    %v384 = vxor.u32 %v380, 2147483648
    %v385 = vmul.f32 %v383, 1.442695
    %v386 = vpow.pop %v385
    %v387 = vmul.f32 %v384, 1.442695
    %v388 = vpow.pop %v387
    %v389 = vadd.f32 %v386, 1.0
    %v390 = vadd.f32 %v388, 1.0
    %v391 = vrcp.pop %v389
    %v392 = vmul.f32 1.0, %v391
    %v393 = vrcp.pop %v390
    %v394 = vmul.f32 1.0, %v393
    %395 = vst.msk [vmem:[%s10] sm:$0xff] %vm126, %v392
    %396 = vst.msk [vmem:[%s10 + $0x8] sm:$0xff] %vm126, %v394
    // Predicated region
    $region38: #{tpu_custom_call.1} parent=1 // pred_check
      _
    $region39: #{tpu_custom_call.1} parent=1 // pred_check_branch
      %398 = sbr.rel (0) target = $region41
    $region40: #{tpu_custom_call.1} parent=1 // pred_region
      %s400 = ssub.s32 64, 64
      %401 = vsyncadd [#allocation3], %s400
      %s403 = sshll.u32 [#allocation2], 4
      %s404 = int_to_ptr.vmem [resolvable:$true] %s403
      %406 = dma.vmem_to_hbm [thread:$0]  %s404, 64, %s9, [#allocation3]
    $region41: #{tpu_custom_call.1} parent=1 // pred_fallthru
      _
    // Predicated region
    $region42: #{tpu_custom_call.1} parent=1 // pred_check
      _
    $region43: #{tpu_custom_call.1} parent=1 // pred_check_branch
      %408 = sbr.rel (0) target = $region45
    $region44: #{tpu_custom_call.1} parent=1 // pred_region
      _
    $region45: #{tpu_custom_call.1} parent=1 // pred_fallthru
      _
    // Predicated region
    $region46: #{tpu_custom_call.1} parent=1 // pred_check
      _
    $region47: #{tpu_custom_call.1} parent=1 // pred_check_branch
      %410 = sbr.rel (0) target = $region49
    $region48: #{tpu_custom_call.1} parent=1 // pred_region
      %411 = dma.done [#allocation3], 64
    $region49: #{tpu_custom_call.1} parent=1 // pred_fallthru
      _
    // Predicated region
    $region50: #{tpu_custom_call.1} parent=1 // pred_check
      _
    $region51: #{tpu_custom_call.1} parent=1 // pred_check_branch
      %413 = sbr.rel (0) target = $region53
    $region52: #{tpu_custom_call.1} parent=1 // pred_region
      _
    $region53: #{tpu_custom_call.1} parent=1 // pred_fallthru
      _
    %414 = vsyncpa [#allocation3], 1

</llo_original>
